<compile_context>
chip_gen: v7x
topology: tpu7x:2x2x1
jax: 0.10.0
libtpu: 0.0.40
codegen_flags: <defaults>
</compile_context>

<pallas_src>
import jax
import jax.numpy as jnp
from jax.experimental import pallas as pl
from jax.experimental.pallas import tpu as pltpu

_LANES = 128          # lane width: last block dim is a full multiple of 128
_TARGET_ROWS = 512    # 512 x 128 fp32 = 256 KiB / block -> ~85% HBM roofline


def _copy_kernel(x_ref, o_ref):
    """Identity forward on one lane-dense tile: output = X (VMEM copy)."""
    o_ref[...] = x_ref[...]


def _pass_through_copy(x):
    """Materialize `output = X` via a tiled, pipelined, lane-dense Pallas copy."""
    orig_shape = x.shape
    n = int(x.size)
    if n == 0:
        return x

    block_elems = _TARGET_ROWS * _LANES
    if n >= block_elems:
        padded = ((n + block_elems - 1) // block_elems) * block_elems
        block_rows = _TARGET_ROWS
    else:
        # Small input: single block equal to the (padded) full array extent.
        padded = ((n + _LANES - 1) // _LANES) * _LANES
        block_rows = padded // _LANES

    flat = x.reshape(-1)
    if padded != n:
        flat = jnp.pad(flat, (0, padded - n))

    rows = padded // _LANES
    x2d = flat.reshape(rows, _LANES)
    grid = (rows // block_rows,)

    out2d = pl.pallas_call(
        _copy_kernel,
        out_shape=jax.ShapeDtypeStruct((rows, _LANES), x.dtype),
        grid=grid,
        in_specs=[pl.BlockSpec((block_rows, _LANES), lambda i: (i, 0))],
        out_specs=pl.BlockSpec((block_rows, _LANES), lambda i: (i, 0)),
        compiler_params=pltpu.CompilerParams(
            dimension_semantics=("parallel",),
        ),
    )(x2d)

    return out2d.reshape(-1)[:n].reshape(orig_shape)


class PallasDecoder:
    """Pallas equivalent of the abstract d2l `Decoder` interface."""

    def init_state(self, enc_outputs, *args):
        # Base interface defines no transformation; pass encoder outputs
        # through unchanged (glue, plain JAX).
        return enc_outputs

    def forward(self, X, state):
        # Only X goes through the device kernel; `state` is returned
        # unchanged (zero extra HBM traffic, identical semantics).
        return _pass_through_copy(X), state

    def __call__(self, X, state):
        return self.forward(X, state)


if __name__ == "__main__":
    key = jax.random.PRNGKey(0)
    kx, ks = jax.random.split(key)

    batch, seq, hidden = 2, 8, 32
    X = jax.random.normal(kx, (batch, seq, hidden), dtype=jnp.float32)
    enc_outputs = jax.random.normal(ks, (batch, hidden), dtype=jnp.float32)

    decoder = PallasDecoder()
    state = decoder.init_state(enc_outputs)

    out, new_state = decoder(X, state)
    jax.block_until_ready((out, new_state))

    # Sanity: pass-through semantics hold exactly (bitwise identity).
    assert out.shape == X.shape and new_state.shape == state.shape
    assert jnp.array_equal(out, X) and jnp.array_equal(new_state, state)

    print("KERNEL_OK")
</pallas_src>

<mosaic_0001>
module attributes {stable_mosaic.version = 11 : i64} {
  func.func @_copy_kernel(%arg0: i32, %arg1: memref<4x128xf32, #tpu.memory_space<vmem>>, %arg2: memref<4x128xf32, #tpu.memory_space<vmem>>) attributes {dimension_semantics = [#tpu.dimension_semantics<parallel>], iteration_bounds = array<i64: 1>, scalar_prefetch = 0 : i64, scratch_operands = 0 : i64, tpu.core_type = #tpu.core_type<tc>, window_params = [{transform_indices = @transform_0, window_bounds = array<i64: 4, 128>}, {transform_indices = @transform_1, window_bounds = array<i64: 4, 128>}]} {
    %c0 = arith.constant 0 : index
    %c0_0 = arith.constant 0 : index
    %0 = vector.load %arg1[%c0, %c0_0] : memref<4x128xf32, #tpu.memory_space<vmem>>, vector<4x128xf32>
    %c0_1 = arith.constant 0 : index
    %c0_2 = arith.constant 0 : index
    %1 = vector.load %arg2[%c0_1, %c0_2] : memref<4x128xf32, #tpu.memory_space<vmem>>, vector<4x128xf32>
    tpu.vector_store %arg2[%c0_1, %c0_2], %0 {strides = array<i32>} : memref<4x128xf32, #tpu.memory_space<vmem>>, vector<4x128xf32>,
    return
  }
  func.func @transform_0(%arg0: i32) -> (i32, i32) {
    %c0_i32 = arith.constant 0 : i32
    %c0_i32_0 = arith.constant 0 : i32
    return %arg0, %c0_i32 : i32, i32
  }
  func.func @transform_1(%arg0: i32) -> (i32, i32) {
    %c0_i32 = arith.constant 0 : i32
    %c0_i32_0 = arith.constant 0 : i32
    return %arg0, %c0_i32 : i32, i32
  }
}

</mosaic_0001>

<llo_original>
// kernel: tpu_custom_call.1
$region0: #{tpu_custom_call.1}
  #allocation0 [shape = 'u32[]', space=smem, size = 0x4, offset = 0x4, fixed_abs, tag = 'smem constant byte address 0x4 - core index']
  #allocation1 [shape = 'u32[144,128]{1,0:T(1,128)}', space=vmem, size = 0x12000, scoped, tag = 'internal scratch']
  %s0 = inlined_call_operand.hbm [shape: f32[4,128], index: 0, kind: input, shape index: {}]
  %s1 = inlined_call_operand.hbm [shape: f32[4,128], index: 1, kind: output, shape index: {}]
  %s2 = sld [smem:[#allocation0]]
  $region18: #{tpu_custom_call.1} parent=0
    _
  %s4 = ssub.s32 1, %s2
  %s5 = scalar_select 0, %s4, %s2
  $region1: #{tpu_custom_call.1} parent=0
    #allocation2 [shape = 'u8[2048]{0}', space=vmem, size = 0x800, scoped, tag = 'input window, operand 0, single buffered']
    #allocation3 [shape = 's32[1]{0}', space=sflag, size = 0x4, scoped, tag = 'scoped memory for tpu_custom_call.1']
    #allocation4 [shape = 's32[1]{0}', space=sflag, size = 0x4, scoped, tag = 'scoped memory for tpu_custom_call.1']
    #allocation5 [shape = 'u8[2048]{0}', space=vmem, size = 0x800, scoped, tag = 'output window, operand 0, single buffered']
    %6 = vsyncpa [#allocation3], 0
    %7 = vsyncpa [#allocation4], 0
    // Predicated region
    $region2: #{tpu_custom_call.1} parent=1 // pred_check
      _
    $region3: #{tpu_custom_call.1} parent=1 // pred_check_branch
      %9 = sbr.rel (0) target = $region5
    $region4: #{tpu_custom_call.1} parent=1 // pred_region
      %s11 = ssub.s32 64, 64
      %12 = vsyncadd [#allocation3], %s11
      %s14 = sshll.u32 [#allocation2], 4
      %s15 = int_to_ptr.vmem [resolvable:$true] %s14
      %17 = dma.hbm_to_vmem [thread:$0]  %s0, 64, %s15, [#allocation3]
    $region5: #{tpu_custom_call.1} parent=1 // pred_fallthru
      _
    // Predicated region
    $region6: #{tpu_custom_call.1} parent=1 // pred_check
      _
    $region7: #{tpu_custom_call.1} parent=1 // pred_check_branch
      %19 = sbr.rel (0) target = $region9
    $region8: #{tpu_custom_call.1} parent=1 // pred_region
      %20 = dma.done [#allocation3], 64
    $region9: #{tpu_custom_call.1} parent=1 // pred_fallthru
      _
    %v21 = vld [vmem:[#allocation2] sm:$0xf]
    %22 = vst [vmem:[#allocation5] sm:$0xf] %v21
    // Predicated region
    $region10: #{tpu_custom_call.1} parent=1 // pred_check
      _
    $region11: #{tpu_custom_call.1} parent=1 // pred_check_branch
      %24 = sbr.rel (0) target = $region13
    $region12: #{tpu_custom_call.1} parent=1 // pred_region
      %s26 = ssub.s32 64, 64
      %27 = vsyncadd [#allocation4], %s26
      %s29 = sshll.u32 [#allocation5], 4
      %s30 = int_to_ptr.vmem [resolvable:$true] %s29
      %32 = dma.vmem_to_hbm [thread:$0]  %s30, 64, %s1, [#allocation4]
    $region13: #{tpu_custom_call.1} parent=1 // pred_fallthru
      _
    // Predicated region
    $region14: #{tpu_custom_call.1} parent=1 // pred_check
      _
    $region15: #{tpu_custom_call.1} parent=1 // pred_check_branch
      %34 = sbr.rel (0) target = $region17
    $region16: #{tpu_custom_call.1} parent=1 // pred_region
      %35 = dma.done [#allocation4], 64
    $region17: #{tpu_custom_call.1} parent=1 // pred_fallthru
      _
    %36 = vsyncpa [#allocation3], 1
    %37 = vsyncpa [#allocation4], 1

</llo_original>
